<compile_context>
chip_gen: v7x
topology: tpu7x:2x2x1
jax: 0.10.0
libtpu: 0.0.40
codegen_flags: <defaults>
</compile_context>

<pallas_src>
import functools

import jax
import jax.numpy as jnp
from jax import lax
from jax.experimental import pallas as pl
from jax.experimental.pallas import tpu as pltpu

_EPS = 1e-5
_LANE = 128


def _round_up(v, m):
    return ((v + m - 1) // m) * m


# ---------------------------------------------------------------------------
# K1: conv1 (3x3 stride 2) + pool (1x1 stride 2, bias) + BN1 partial stats.
# Input arrives space-to-depth'd: xs[n,i,j,(py,px,ci)] = xpad[n,2i+py,2j+px,ci],
# so the four (qy,qx) taps are unit-offset slices and one matmul does the conv.
# ---------------------------------------------------------------------------
def _k1_conv1_pool(xs_ref, w_ref, bpool_ref, y1_ref, res_ref, st_ref,
                   *, oh, ow, c1p, cp):
    xp = xs_ref[0].astype(jnp.float32)                        # (oh+1, ow+1, c1p)
    taps = [xp[qy:qy + oh, qx:qx + ow, :].reshape(oh * ow, c1p)
            for qy in (0, 1) for qx in (0, 1)]
    patch = jnp.concatenate(taps, axis=-1).astype(jnp.bfloat16)   # (oh*ow, 4*c1p)
    acc = jnp.dot(patch, w_ref[...], preferred_element_type=jnp.float32)
    y1 = acc[:, :cp]                                          # conv1, pre-BN
    res = acc[:, cp:] + bpool_ref[...]                        # pool branch
    y1_ref[0] = y1.reshape(oh, ow, cp)
    res_ref[0] = res.reshape(oh, ow, cp)
    st_ref[0, 0:1, :] = jnp.sum(y1, axis=0, keepdims=True)          # sum
    st_ref[0, 1:2, :] = jnp.sum(y1 * y1, axis=0, keepdims=True)     # sum of sq


# ---------------------------------------------------------------------------
# K2: BN1 (batch stats, affine) + ReLU -> zero-padded VMEM halo scratch ->
# conv2 (3x3 stride 1) as one fused K=9*C bf16 matmul, + BN2 partial stats.
# ---------------------------------------------------------------------------
def _k2_bn1_relu_conv2(y1_ref, sc_ref, sh_ref, w_ref, y2_ref, st_ref, hp_ref,
                       *, oh, ow, cp):
    a = y1_ref[0].reshape(oh * ow, cp)
    h = jnp.maximum(a * sc_ref[...] + sh_ref[...], 0.0)       # BN1 + ReLU (f32)
    hp_ref[...] = jnp.zeros_like(hp_ref)                      # zero halo border
    hp_ref[1:oh + 1, 1:ow + 1, :] = h.reshape(oh, ow, cp)
    taps = [hp_ref[dy:dy + oh, dx:dx + ow, :].reshape(oh * ow, cp)
            for dy in range(3) for dx in range(3)]
    patch = jnp.concatenate(taps, axis=-1).astype(jnp.bfloat16)   # (oh*ow, 9*cp)
    y2 = jnp.dot(patch, w_ref[...], preferred_element_type=jnp.float32)
    y2_ref[0] = y2.reshape(oh, ow, cp)
    st_ref[0, 0:1, :] = jnp.sum(y2, axis=0, keepdims=True)
    st_ref[0, 1:2, :] = jnp.sum(y2 * y2, axis=0, keepdims=True)


# ---------------------------------------------------------------------------
# K3: BN2 (batch stats, affine) + residual add + ReLU (lane-dense elementwise).
# ---------------------------------------------------------------------------
def _k3_bn2_add_relu(y2_ref, res_ref, sc_ref, sh_ref, out_ref, *, oh, ow, cp):
    y2 = y2_ref[0].reshape(oh * ow, cp)
    res = res_ref[0].reshape(oh * ow, cp)
    out = jnp.maximum(y2 * sc_ref[...] + sh_ref[...] + res, 0.0)
    out_ref[0] = out.reshape(oh, ow, cp)


def _bn_affine(stats, count, gamma_p, beta_p):
    """Fold global batch mean/var (biased) + affine params into scale/shift."""
    s = jnp.sum(stats, axis=0)                                # (2, Cp)
    mean = s[0] / count
    var = jnp.maximum(s[1] / count - mean * mean, 0.0)
    scale = gamma_p * lax.rsqrt(var + _EPS)
    shift = beta_p - mean * scale
    cp = scale.shape[0]
    return scale.reshape(1, cp), shift.reshape(1, cp)


def resblockdown_forward(x_nchw, conv1_w, bn1_g, bn1_b,
                         conv2_w, bn2_g, bn2_b, pool_w, pool_b):
    n, cin, h, w = x_nchw.shape
    cout = conv1_w.shape[0]
    oh = (h - 1) // 2 + 1          # conv(3,s=2,p=1) and conv(1,s=2,p=0) sizes agree
    ow = (w - 1) // 2 + 1
    c1p = _round_up(4 * cin, _LANE)        # lane-padded space-to-depth channels
    cp = _round_up(cout, _LANE)            # lane-padded output channels
    count = float(n * oh * ow)
    f32 = jnp.float32

    x = jnp.transpose(x_nchw, (0, 2, 3, 1)).astype(f32)                 # NHWC

    # ---- wrapper-side space-to-depth (1:1 relayout, no 9x im2col blowup) ----
    xpad = jnp.pad(x, ((0, 0), (1, 2 * oh + 1 - h), (1, 2 * ow + 1 - w), (0, 0)))
    xs = xpad.reshape(n, oh + 1, 2, ow + 1, 2, cin)
    xs = jnp.transpose(xs, (0, 1, 3, 2, 4, 5)).reshape(n, oh + 1, ow + 1, 4 * cin)
    xs = jnp.pad(xs, ((0, 0), (0, 0), (0, 0), (0, c1p - 4 * cin))).astype(jnp.bfloat16)

    # ---- fused conv1 + pool weight: [4*c1p, 2*cp] bf16 MXU operand ----
    w1t = jnp.transpose(conv1_w, (2, 3, 1, 0)).astype(f32)              # (dy,dx,ci,co)
    wk1 = jnp.zeros((4 * c1p, 2 * cp), f32)
    for qy in range(2):
        for qx in range(2):
            for py in range(2):
                for px in range(2):
                    dy, dx = 2 * qy + py, 2 * qx + px
                    if dy > 2 or dx > 2:
                        continue
                    r = (qy * 2 + qx) * c1p + (py * 2 + px) * cin
                    wk1 = wk1.at[r:r + cin, 0:cout].set(w1t[dy, dx])
    # pool (1x1, stride 2) reads phase (py,px)=(1,1) of the (qy,qx)=(0,0) tap.
    wpt = pool_w.reshape(cout, cin).T.astype(f32)
    wk1 = wk1.at[3 * cin:4 * cin, cp:cp + cout].set(wpt)
    wk1 = wk1.astype(jnp.bfloat16)
    bpool_p = jnp.zeros((1, cp), f32).at[0, :cout].set(pool_b.astype(f32))

    img_spec = pl.BlockSpec((1, oh, ow, cp), lambda i: (i, 0, 0, 0))
    vec_spec = pl.BlockSpec((1, cp), lambda i: (0, 0))
    st_spec = pl.BlockSpec((1, 2, cp), lambda i: (i, 0, 0))
    parallel = pltpu.CompilerParams(dimension_semantics=("parallel",))

    # ---- K1: conv1 + pool + BN1 stats ----
    y1, res, st1 = pl.pallas_call(
        functools.partial(_k1_conv1_pool, oh=oh, ow=ow, c1p=c1p, cp=cp),
        out_shape=(
            jax.ShapeDtypeStruct((n, oh, ow, cp), f32),
            jax.ShapeDtypeStruct((n, oh, ow, cp), f32),
            jax.ShapeDtypeStruct((n, 2, cp), f32),
        ),
        grid=(n,),
        in_specs=[
            pl.BlockSpec((1, oh + 1, ow + 1, c1p), lambda i: (i, 0, 0, 0)),
            pl.BlockSpec((4 * c1p, 2 * cp), lambda i: (0, 0)),
            vec_spec,
        ],
        out_specs=(img_spec, img_spec, st_spec),
        compiler_params=parallel,
    )(xs, wk1, bpool_p)

    # ---- finalize BN1 (global batch stats) on a tiny tensor ----
    g1p = jnp.zeros((cp,), f32).at[:cout].set(bn1_g.astype(f32))
    b1p = jnp.zeros((cp,), f32).at[:cout].set(bn1_b.astype(f32))
    scale1, shift1 = _bn_affine(st1, count, g1p, b1p)

    # ---- conv2 weight: [9*cp, cp] bf16 ----
    w2t = jnp.transpose(conv2_w, (2, 3, 1, 0)).astype(f32)              # (dy,dx,ci,co)
    wk2 = jnp.zeros((9 * cp, cp), f32)
    for dy in range(3):
        for dx in range(3):
            t = dy * 3 + dx
            wk2 = wk2.at[t * cp:t * cp + cout, 0:cout].set(w2t[dy, dx])
    wk2 = wk2.astype(jnp.bfloat16)

    # ---- K2: BN1 + ReLU + conv2 + BN2 stats ----
    y2, st2 = pl.pallas_call(
        functools.partial(_k2_bn1_relu_conv2, oh=oh, ow=ow, cp=cp),
        out_shape=(
            jax.ShapeDtypeStruct((n, oh, ow, cp), f32),
            jax.ShapeDtypeStruct((n, 2, cp), f32),
        ),
        grid=(n,),
        in_specs=[
            img_spec,
            vec_spec,
            vec_spec,
            pl.BlockSpec((9 * cp, cp), lambda i: (0, 0)),
        ],
        out_specs=(img_spec, st_spec),
        scratch_shapes=[pltpu.VMEM((oh + 2, ow + 2, cp), f32)],
        compiler_params=parallel,
    )(y1, scale1, shift1, wk2)

    g2p = jnp.zeros((cp,), f32).at[:cout].set(bn2_g.astype(f32))
    b2p = jnp.zeros((cp,), f32).at[:cout].set(bn2_b.astype(f32))
    scale2, shift2 = _bn_affine(st2, count, g2p, b2p)

    # ---- K3: BN2 + residual + ReLU ----
    outp = pl.pallas_call(
        functools.partial(_k3_bn2_add_relu, oh=oh, ow=ow, cp=cp),
        out_shape=jax.ShapeDtypeStruct((n, oh, ow, cp), f32),
        grid=(n,),
        in_specs=[img_spec, img_spec, vec_spec, vec_spec],
        out_specs=img_spec,
        compiler_params=parallel,
    )(y2, res, scale2, shift2)

    # TODO(synk): BatchNorm running_mean/running_var buffer updates (a training-
    # time side effect, not part of the returned activation) are not emitted.
    return jnp.transpose(outp[:, :, :, :cout], (0, 3, 1, 2))


def resblockdown_reference(x_nchw, conv1_w, bn1_g, bn1_b,
                           conv2_w, bn2_g, bn2_b, pool_w, pool_b):
    """Pure-JAX f32 reference (training-mode BatchNorm, biased variance)."""
    dn = ("NHWC", "HWIO", "NHWC")
    x = jnp.transpose(x_nchw, (0, 2, 3, 1)).astype(jnp.float32)
    c1 = lax.conv_general_dilated(
        x, jnp.transpose(conv1_w, (2, 3, 1, 0)).astype(jnp.float32),
        (2, 2), ((1, 1), (1, 1)), dimension_numbers=dn)
    m1 = jnp.mean(c1, axis=(0, 1, 2))
    v1 = jnp.mean((c1 - m1) ** 2, axis=(0, 1, 2))
    h1 = jnp.maximum((c1 - m1) * lax.rsqrt(v1 + _EPS) * bn1_g + bn1_b, 0.0)
    c2 = lax.conv_general_dilated(
        h1, jnp.transpose(conv2_w, (2, 3, 1, 0)).astype(jnp.float32),
        (1, 1), ((1, 1), (1, 1)), dimension_numbers=dn)
    m2 = jnp.mean(c2, axis=(0, 1, 2))
    v2 = jnp.mean((c2 - m2) ** 2, axis=(0, 1, 2))
    bn2 = (c2 - m2) * lax.rsqrt(v2 + _EPS) * bn2_g + bn2_b
    resd = lax.conv_general_dilated(
        x, jnp.transpose(pool_w, (2, 3, 1, 0)).astype(jnp.float32),
        (2, 2), ((0, 0), (0, 0)), dimension_numbers=dn) + pool_b
    out = jnp.maximum(bn2 + resd, 0.0)
    return jnp.transpose(out, (0, 3, 1, 2))


if __name__ == "__main__":
    key = jax.random.PRNGKey(0)
    ks = jax.random.split(key, 9)
    N, CIN, COUT, H, W = 2, 4, 8, 16, 16
    x = jax.random.normal(ks[0], (N, CIN, H, W), jnp.float32)
    conv1_w = 0.2 * jax.random.normal(ks[1], (COUT, CIN, 3, 3), jnp.float32)
    bn1_g = 1.0 + 0.1 * jax.random.normal(ks[2], (COUT,), jnp.float32)
    bn1_b = 0.1 * jax.random.normal(ks[3], (COUT,), jnp.float32)
    conv2_w = 0.15 * jax.random.normal(ks[4], (COUT, COUT, 3, 3), jnp.float32)
    bn2_g = 1.0 + 0.1 * jax.random.normal(ks[5], (COUT,), jnp.float32)
    bn2_b = 0.1 * jax.random.normal(ks[6], (COUT,), jnp.float32)
    pool_w = 0.3 * jax.random.normal(ks[7], (COUT, CIN, 1, 1), jnp.float32)
    pool_b = 0.1 * jax.random.normal(ks[8], (COUT,), jnp.float32)

    out = jax.block_until_ready(
        resblockdown_forward(x, conv1_w, bn1_g, bn1_b,
                             conv2_w, bn2_g, bn2_b, pool_w, pool_b))
    ref = resblockdown_reference(x, conv1_w, bn1_g, bn1_b,
                                 conv2_w, bn2_g, bn2_b, pool_w, pool_b)
    assert out.shape == (N, COUT, H // 2, W // 2), out.shape
    max_err = float(jnp.max(jnp.abs(out - ref)))
    # bf16 MXU operands (f32 accumulation) vs the pure-f32 reference.
    assert jnp.allclose(out, ref, atol=3e-2, rtol=3e-2), max_err
    print("KERNEL_OK")
</pallas_src>

<mosaic_0001>
module attributes {stable_mosaic.version = 11 : i64} {
  func.func @_k1_conv1_pool(%arg0: i32, %arg1: memref<1x9x9x128xbf16, #tpu.memory_space<vmem>>, %arg2: memref<512x256xbf16, #tpu.memory_space<vmem>>, %arg3: memref<1x128xf32, #tpu.memory_space<vmem>>, %arg4: memref<1x8x8x128xf32, #tpu.memory_space<vmem>>, %arg5: memref<1x8x8x128xf32, #tpu.memory_space<vmem>>, %arg6: memref<1x2x128xf32, #tpu.memory_space<vmem>>) attributes {dimension_semantics = [#tpu.dimension_semantics<parallel>], iteration_bounds = array<i64: 2>, scalar_prefetch = 0 : i64, scratch_operands = 0 : i64, tpu.core_type = #tpu.core_type<tc>, window_params = [{transform_indices = @transform_0, window_bounds = array<i64: 1, 9, 9, 128>}, {pipeline_mode = #tpu.pipeline_mode<synchronous>, transform_indices = @transform_1, window_bounds = array<i64: 512, 256>}, {pipeline_mode = #tpu.pipeline_mode<synchronous>, transform_indices = @transform_2, window_bounds = array<i64: 1, 128>}, {transform_indices = @transform_3, window_bounds = array<i64: 1, 8, 8, 128>}, {transform_indices = @transform_4, window_bounds = array<i64: 1, 8, 8, 128>}, {transform_indices = @transform_5, window_bounds = array<i64: 1, 2, 128>}]} {
    %c0 = arith.constant 0 : index
    %c0_0 = arith.constant 0 : index
    %c0_1 = arith.constant 0 : index
    %c0_2 = arith.constant 0 : index
    %0 = vector.load %arg1[%c0, %c0_0, %c0_1, %c0_2] : memref<1x9x9x128xbf16, #tpu.memory_space<vmem>>, vector<1x9x9x128xbf16>
    %1 = vector.shape_cast %0 : vector<1x9x9x128xbf16> to vector<9x9x128xbf16>
    %2 = arith.extf %1 : vector<9x9x128xbf16> to vector<9x9x128xf32>
    %3 = vector.extract_strided_slice %2 {offsets = [0, 0, 0], sizes = [8, 8, 128], strides = [1, 1, 1]} : vector<9x9x128xf32> to vector<8x8x128xf32>
    %4 = vector.shape_cast %3 : vector<8x8x128xf32> to vector<64x128xf32>
    %5 = vector.extract_strided_slice %2 {offsets = [0, 1, 0], sizes = [8, 8, 128], strides = [1, 1, 1]} : vector<9x9x128xf32> to vector<8x8x128xf32>
    %6 = vector.shape_cast %5 : vector<8x8x128xf32> to vector<64x128xf32>
    %7 = vector.extract_strided_slice %2 {offsets = [1, 0, 0], sizes = [8, 8, 128], strides = [1, 1, 1]} : vector<9x9x128xf32> to vector<8x8x128xf32>
    %8 = vector.shape_cast %7 : vector<8x8x128xf32> to vector<64x128xf32>
    %9 = vector.extract_strided_slice %2 {offsets = [1, 1, 0], sizes = [8, 8, 128], strides = [1, 1, 1]} : vector<9x9x128xf32> to vector<8x8x128xf32>
    %10 = vector.shape_cast %9 : vector<8x8x128xf32> to vector<64x128xf32>
    %11 = tpu.concatenate %4, %6, %8, %10 in 1 : vector<64x128xf32>, vector<64x128xf32>, vector<64x128xf32>, vector<64x128xf32> -> vector<64x512xf32>
    %12 = arith.truncf %11 : vector<64x512xf32> to vector<64x512xbf16>
    %c0_3 = arith.constant 0 : index
    %c0_4 = arith.constant 0 : index
    %13 = vector.load %arg2[%c0_3, %c0_4] : memref<512x256xbf16, #tpu.memory_space<vmem>>, vector<512x256xbf16>
    %cst = arith.constant dense<0.000000e+00> : vector<64x256xf32>
    %14 = tpu.matmul %12, %13, %cst {dimension_numbers = #tpu.dot_dimension_numbers<[1], [0], [0], [1], [0, 0, 1, 1], [], []>} : vector<64x512xbf16>, vector<512x256xbf16>, vector<64x256xf32> -> vector<64x256xf32>
    %15 = vector.extract_strided_slice %14 {offsets = [0, 0], sizes = [64, 128], strides = [1, 1]} : vector<64x256xf32> to vector<64x128xf32>
    %16 = vector.extract_strided_slice %14 {offsets = [0, 128], sizes = [64, 128], strides = [1, 1]} : vector<64x256xf32> to vector<64x128xf32>
    %c0_5 = arith.constant 0 : index
    %c0_6 = arith.constant 0 : index
    %17 = vector.load %arg3[%c0_5, %c0_6] : memref<1x128xf32, #tpu.memory_space<vmem>>, vector<1x128xf32>
    %18 = vector.broadcast %17 : vector<1x128xf32> to vector<64x128xf32>
    %19 = arith.addf %16, %18 : vector<64x128xf32>
    %20 = vector.shape_cast %15 : vector<64x128xf32> to vector<8x8x128xf32>
    %c0_7 = arith.constant 0 : index
    %c0_8 = arith.constant 0 : index
    %c0_9 = arith.constant 0 : index
    %c0_10 = arith.constant 0 : index
    %21 = vector.load %arg4[%c0_7, %c0_8, %c0_9, %c0_10] : memref<1x8x8x128xf32, #tpu.memory_space<vmem>>, vector<1x8x8x128xf32>
    %22 = vector.shape_cast %21 : vector<1x8x8x128xf32> to vector<8x8x128xf32>
    %23 = vector.shape_cast %20 : vector<8x8x128xf32> to vector<1x8x8x128xf32>
    tpu.vector_store %arg4[%c0_7, %c0_8, %c0_9, %c0_10], %23 {strides = array<i32>} : memref<1x8x8x128xf32, #tpu.memory_space<vmem>>, vector<1x8x8x128xf32>,
    %24 = vector.shape_cast %19 : vector<64x128xf32> to vector<8x8x128xf32>
    %c0_11 = arith.constant 0 : index
    %c0_12 = arith.constant 0 : index
    %c0_13 = arith.constant 0 : index
    %c0_14 = arith.constant 0 : index
    %25 = vector.load %arg5[%c0_11, %c0_12, %c0_13, %c0_14] : memref<1x8x8x128xf32, #tpu.memory_space<vmem>>, vector<1x8x8x128xf32>
    %26 = vector.shape_cast %25 : vector<1x8x8x128xf32> to vector<8x8x128xf32>
    %27 = vector.shape_cast %24 : vector<8x8x128xf32> to vector<1x8x8x128xf32>
    tpu.vector_store %arg5[%c0_11, %c0_12, %c0_13, %c0_14], %27 {strides = array<i32>} : memref<1x8x8x128xf32, #tpu.memory_space<vmem>>, vector<1x8x8x128xf32>,
    %cst_15 = arith.constant dense<0.000000e+00> : vector<128xf32>
    %28 = vector.multi_reduction <add>, %15, %cst_15 [0] : vector<64x128xf32> to vector<128xf32>
    %29 = vector.shape_cast %28 : vector<128xf32> to vector<1x128xf32>
    %c0_16 = arith.constant 0 : index
    %c0_17 = arith.constant 0 : index
    %c0_18 = arith.constant 0 : index
    %30 = vector.load %arg6[%c0_16, %c0_17, %c0_18] : memref<1x2x128xf32, #tpu.memory_space<vmem>>, vector<1x1x128xf32>
    %31 = vector.shape_cast %30 : vector<1x1x128xf32> to vector<1x128xf32>
    %32 = vector.shape_cast %29 : vector<1x128xf32> to vector<1x1x128xf32>
    tpu.vector_store %arg6[%c0_16, %c0_17, %c0_18], %32 {strides = array<i32>} : memref<1x2x128xf32, #tpu.memory_space<vmem>>, vector<1x1x128xf32>,
    %33 = arith.mulf %15, %15 : vector<64x128xf32>
    %cst_19 = arith.constant dense<0.000000e+00> : vector<128xf32>
    %34 = vector.multi_reduction <add>, %33, %cst_19 [0] : vector<64x128xf32> to vector<128xf32>
    %35 = vector.shape_cast %34 : vector<128xf32> to vector<1x128xf32>
    %c0_20 = arith.constant 0 : index
    %c1 = arith.constant 1 : index
    %c0_21 = arith.constant 0 : index
    %36 = vector.load %arg6[%c0_20, %c1, %c0_21] : memref<1x2x128xf32, #tpu.memory_space<vmem>>, vector<1x1x128xf32>
    %37 = vector.shape_cast %36 : vector<1x1x128xf32> to vector<1x128xf32>
    %38 = vector.shape_cast %35 : vector<1x128xf32> to vector<1x1x128xf32>
    tpu.vector_store %arg6[%c0_20, %c1, %c0_21], %38 {strides = array<i32>} : memref<1x2x128xf32, #tpu.memory_space<vmem>>, vector<1x1x128xf32>,
    return
  }
  func.func @transform_0(%arg0: i32) -> (i32, i32, i32, i32) {
    %c0_i32 = arith.constant 0 : i32
    %c0_i32_0 = arith.constant 0 : i32
    %c0_i32_1 = arith.constant 0 : i32
    %c0_i32_2 = arith.constant 0 : i32
    return %arg0, %c0_i32, %c0_i32_0, %c0_i32_1 : i32, i32, i32, i32
  }
  func.func @transform_1(%arg0: i32) -> (i32, i32) {
    %c0_i32 = arith.constant 0 : i32
    %c0_i32_0 = arith.constant 0 : i32
    %c0_i32_1 = arith.constant 0 : i32
    return %c0_i32, %c0_i32_0 : i32, i32
  }
  func.func @transform_2(%arg0: i32) -> (i32, i32) {
    %c0_i32 = arith.constant 0 : i32
    %c0_i32_0 = arith.constant 0 : i32
    %c0_i32_1 = arith.constant 0 : i32
    return %c0_i32, %c0_i32_0 : i32, i32
  }
  func.func @transform_3(%arg0: i32) -> (i32, i32, i32, i32) {
    %c0_i32 = arith.constant 0 : i32
    %c0_i32_0 = arith.constant 0 : i32
    %c0_i32_1 = arith.constant 0 : i32
    %c0_i32_2 = arith.constant 0 : i32
    return %arg0, %c0_i32, %c0_i32_0, %c0_i32_1 : i32, i32, i32, i32
  }
  func.func @transform_4(%arg0: i32) -> (i32, i32, i32, i32) {
    %c0_i32 = arith.constant 0 : i32
    %c0_i32_0 = arith.constant 0 : i32
    %c0_i32_1 = arith.constant 0 : i32
    %c0_i32_2 = arith.constant 0 : i32
    return %arg0, %c0_i32, %c0_i32_0, %c0_i32_1 : i32, i32, i32, i32
  }
  func.func @transform_5(%arg0: i32) -> (i32, i32, i32) {
    %c0_i32 = arith.constant 0 : i32
    %c0_i32_0 = arith.constant 0 : i32
    %c0_i32_1 = arith.constant 0 : i32
    return %arg0, %c0_i32, %c0_i32_0 : i32, i32, i32
  }
}

</mosaic_0001>

<llo_original>
// kernel: tpu_custom_call.1
$region0: #{tpu_custom_call.1}
  #allocation0 [shape = 'u32[]', space=smem, size = 0x4, offset = 0x4, fixed_abs, tag = 'smem constant byte address 0x4 - core index']
  #allocation1 [shape = 'u32[144,128]{1,0:T(1,128)}', space=vmem, size = 0x12000, scoped, tag = 'internal scratch']
  %s0 = inlined_call_operand.vmem [shape: bf16[2,9,9,128], index: 0, kind: input, shape index: {}]
  %s1 = inlined_call_operand.hbm [shape: bf16[512,256], index: 1, kind: input, shape index: {}]
  %s2 = inlined_call_operand.vmem [shape: f32[1,128], index: 2, kind: input, shape index: {}]
  %s3 = inlined_call_operand.hbm [shape: f32[2,8,8,128], index: 3, kind: output, shape index: {0}]
  %s4 = inlined_call_operand.hbm [shape: f32[2,8,8,128], index: 4, kind: output, shape index: {1}]
  %s5 = inlined_call_operand.hbm [shape: f32[2,2,128], index: 5, kind: output, shape index: {2}]
  %6 = xla_tuple %s3, %s4, %s5
  %s7 = sld [smem:[#allocation0]]
  $region65: #{tpu_custom_call.1} parent=0
    _
  %s9 = ssub.s32 1, %s7
  %s10 = scalar_select 0, %s9, %s7
  $region1: #{tpu_custom_call.1} parent=0
    #allocation2 [shape = 'u8[262144]{0}', space=vmem, size = 0x40000, scoped, tag = 'input window, operand 1, single buffered']
    #allocation3 [shape = 's32[2]{0}', space=sflag, size = 0x8, scoped, tag = 'scoped memory for tpu_custom_call.1']
    #allocation4 [shape = 's32[2]{0}', space=sflag, size = 0x8, scoped, tag = 'scoped memory for tpu_custom_call.1']
    #allocation5 [shape = 'u8[65536]{0}', space=vmem, size = 0x10000, scoped, tag = 'output window, operand 0']
    #allocation6 [shape = 'u8[65536]{0}', space=vmem, size = 0x10000, scoped, tag = 'output window, operand 1']
    #allocation7 [shape = 's32[2]{0}', space=sflag, size = 0x8, scoped, tag = 'scoped memory for tpu_custom_call.1']
    #allocation8 [shape = 'u8[2048]{0}', space=vmem, size = 0x800, scoped, tag = 'output window, operand 2']
    %11 = vsyncpa [#allocation3], 0
    %12 = vsyncpa [#allocation4], 0
    %s13 = scalar_lea.sflag [#allocation4], 1
    %14 = vsyncpa %s13, 0
    %15 = vsyncpa [#allocation7], 0
    %s16 = scalar_lea.sflag [#allocation7], 1
    %17 = vsyncpa %s16, 0
    loop: start=0, step=1, limit=4
    $region2: #{tpu_custom_call.1} parent=1 // loop_pre_header
      _
    $region3: #{tpu_custom_call.1} parent=1 // loop_header
      %s19 = sphi 0, %s23
      %p20 = scmp.ge.s32.totalorder %s19, 4
      %s29 = sphi 0, %s31
      %s32 = sphi 0, %s29
      %s33 = sphi 0, %s32
      %s49 = sphi 0, %s33
      %s53 = sphi 0, %s53
      %s55 = sphi 0, %s53
      %s56 = sphi 0, %s55
      %s70 = sphi 0, %s56
      %s74 = sphi 0, %s74
      %s76 = sphi 0, %s74
      %s77 = sphi 0, %s76
      %s91 = sphi 0, %s77
      %s97 = sphi 0, %s99
      %s100 = sphi 0, %s97
      %s101 = sphi 0, %s100
      %s117 = sphi 0, %s101
      %s123 = sphi 0, %s125
      %s126 = sphi 0, %s123
      %s127 = sphi 0, %s126
      %s143 = sphi 0, %s127
      %s149 = sphi 0, %s151
      %s152 = sphi 0, %s149
      %s153 = sphi 0, %s152
      %s169 = sphi 0, %s153
    $region4: #{tpu_custom_call.1} parent=1 // loop_header_branch
      %22 = sbr.rel (%p20) target = $region8
    $region5: #{tpu_custom_call.1} parent=1 // loop_body
      %s24 = ssub.s32 %s19, 1
      %s25 = ssub.s32 %s19, 2
      %s26 = sadd.s32 %s19, 1
      %s27 = ssub.s32 %s19, %s26
      %p28 = scmp.eq.s32.totalorder %s27, 0
      %s30 = sadd.s32 %s29, 1
      %s31 = scalar_select %p28, %s29, %s30
      %p34 = pneg %p28
      %p35 = scmp.eq.s32.totalorder %s19, 1
      %p36 = por %p34, %p35
      %p37 = scmp.ne.s32.totalorder %s29, %s32
      %p38 = scmp.eq.s32.totalorder %s19, 0
      %p39 = por %p37, %p38
      %p40 = scmp.ne.s32.totalorder %s29, %s32
      %p41 = scmp.eq.s32.totalorder %s24, 1
      %p42 = por %p40, %p41
      %p43 = scmp.ne.s32.totalorder %s32, %s33
      %p44 = scmp.eq.s32.totalorder %s24, 0
      %p45 = por %p43, %p44
      %p46 = scmp.ne.s32.totalorder %s32, %s33
      %p47 = scmp.eq.s32.totalorder %s25, 1
      %p48 = por %p46, %p47
      %p50 = scmp.ne.s32.totalorder %s33, %s49
      %p51 = scmp.eq.s32.totalorder %s25, 0
      %p52 = por %p50, %p51
      %s54 = sadd.s32 %s53, 1
      %p57 = scmp.eq.s32.totalorder %s19, 1
      %p58 = scmp.ne.s32.totalorder %s53, %s55
      %p59 = scmp.eq.s32.totalorder %s19, 0
      %p60 = por %p58, %p59
      %p61 = scmp.ne.s32.totalorder %s53, %s55
      %p62 = scmp.eq.s32.totalorder %s24, 1
      %p63 = por %p61, %p62
      %p64 = scmp.ne.s32.totalorder %s55, %s56
      %p65 = scmp.eq.s32.totalorder %s24, 0
      %p66 = por %p64, %p65
      %p67 = scmp.ne.s32.totalorder %s55, %s56
      %p68 = scmp.eq.s32.totalorder %s25, 1
      %p69 = por %p67, %p68
      %p71 = scmp.ne.s32.totalorder %s56, %s70
      %p72 = scmp.eq.s32.totalorder %s25, 0
      %p73 = por %p71, %p72
      %s75 = sadd.s32 %s74, 1
      %p78 = scmp.eq.s32.totalorder %s19, 1
      %p79 = scmp.ne.s32.totalorder %s74, %s76
      %p80 = scmp.eq.s32.totalorder %s19, 0
      %p81 = por %p79, %p80
      %p82 = scmp.ne.s32.totalorder %s74, %s76
      %p83 = scmp.eq.s32.totalorder %s24, 1
      %p84 = por %p82, %p83
      %p85 = scmp.ne.s32.totalorder %s76, %s77
      %p86 = scmp.eq.s32.totalorder %s24, 0
      %p87 = por %p85, %p86
      %p88 = scmp.ne.s32.totalorder %s76, %s77
      %p89 = scmp.eq.s32.totalorder %s25, 1
      %p90 = por %p88, %p89
      %p92 = scmp.ne.s32.totalorder %s77, %s91
      %p93 = scmp.eq.s32.totalorder %s25, 0
      %p94 = por %p92, %p93
      %s95 = ssub.s32 %s19, %s26
      %p96 = scmp.eq.s32.totalorder %s95, 0
      %s98 = sadd.s32 %s97, 1
      %s99 = scalar_select %p96, %s97, %s98
      %p102 = pneg %p96
      %p103 = scmp.eq.s32.totalorder %s19, 1
      %p104 = por %p102, %p103
      %p105 = scmp.ne.s32.totalorder %s97, %s100
      %p106 = scmp.eq.s32.totalorder %s19, 0
      %p107 = por %p105, %p106
      %p108 = scmp.ne.s32.totalorder %s97, %s100
      %p109 = scmp.eq.s32.totalorder %s24, 1
      %p110 = por %p108, %p109
      %p111 = scmp.ne.s32.totalorder %s100, %s101
      %p112 = scmp.eq.s32.totalorder %s24, 0
      %p113 = por %p111, %p112
      %p114 = scmp.ne.s32.totalorder %s100, %s101
      %p115 = scmp.eq.s32.totalorder %s25, 1
      %p116 = por %p114, %p115
      %p118 = scmp.ne.s32.totalorder %s101, %s117
      %p119 = scmp.eq.s32.totalorder %s25, 0
      %p120 = por %p118, %p119
      %s121 = ssub.s32 %s19, %s26
      %p122 = scmp.eq.s32.totalorder %s121, 0
      %s124 = sadd.s32 %s123, 1
      %s125 = scalar_select %p122, %s123, %s124
      %p128 = pneg %p122
      %p129 = scmp.eq.s32.totalorder %s19, 1
      %p130 = por %p128, %p129
      %p131 = scmp.ne.s32.totalorder %s123, %s126
      %p132 = scmp.eq.s32.totalorder %s19, 0
      %p133 = por %p131, %p132
      %p134 = scmp.ne.s32.totalorder %s123, %s126
      %p135 = scmp.eq.s32.totalorder %s24, 1
      %p136 = por %p134, %p135
      %p137 = scmp.ne.s32.totalorder %s126, %s127
      %p138 = scmp.eq.s32.totalorder %s24, 0
      %p139 = por %p137, %p138
      %p140 = scmp.ne.s32.totalorder %s126, %s127
      %p141 = scmp.eq.s32.totalorder %s25, 1
      %p142 = por %p140, %p141
      %p144 = scmp.ne.s32.totalorder %s127, %s143
      %p145 = scmp.eq.s32.totalorder %s25, 0
      %p146 = por %p144, %p145
      %s147 = ssub.s32 %s19, %s26
      %p148 = scmp.eq.s32.totalorder %s147, 0
      %s150 = sadd.s32 %s149, 1
      %s151 = scalar_select %p148, %s149, %s150
      %p154 = pneg %p148
      %p155 = scmp.eq.s32.totalorder %s19, 1
      %p156 = por %p154, %p155
      %p157 = scmp.ne.s32.totalorder %s149, %s152
      %p158 = scmp.eq.s32.totalorder %s19, 0
      %p159 = por %p157, %p158
      %p160 = scmp.ne.s32.totalorder %s149, %s152
      %p161 = scmp.eq.s32.totalorder %s24, 1
      %p162 = por %p160, %p161
      %p163 = scmp.ne.s32.totalorder %s152, %s153
      %p164 = scmp.eq.s32.totalorder %s24, 0
      %p165 = por %p163, %p164
      %p166 = scmp.ne.s32.totalorder %s152, %s153
      %p167 = scmp.eq.s32.totalorder %s25, 1
      %p168 = por %p166, %p167
      %p170 = scmp.ne.s32.totalorder %s153, %s169
      %p171 = scmp.eq.s32.totalorder %s25, 0
      %p172 = por %p170, %p171
      %p173 = scmp.le.s32.totalorder 1, %s19
      %p174 = scmp.lt.s32.totalorder %s19, 3
      %p175 = pnand %p173, %p174
      %p176 = pneg %p175
      // Predicated region
      $region9: #{tpu_custom_call.1} parent=5 // pred_check
        _
      $region10: #{tpu_custom_call.1} parent=5 // pred_check_branch
        %178 = sbr.rel (%p175) target = $region12
      $region11: #{tpu_custom_call.1} parent=5 // pred_region
        %s179 = ssub.s32 %s19, 1
        // Predicated region
        $region13: #{tpu_custom_call.1} parent=11 // pred_check
          %p180 = pneg %p66
        $region14: #{tpu_custom_call.1} parent=11 // pred_check_branch
          %182 = sbr.rel (%p180) target = $region16
        $region15: #{tpu_custom_call.1} parent=11 // pred_region
          %s184 = ssub.s32 8192, 8192
          %185 = vsyncadd [#allocation3], %s184
          %s186 = sshll.u32 [#allocation2], 4
          %s187 = int_to_ptr.vmem [resolvable:$true] %s186
          %192 = dma.hbm_to_vmem [thread:$0]  %s1, 8192, %s187, [#allocation3], 128, 128, 8
        $region16: #{tpu_custom_call.1} parent=11 // pred_fallthru
          _
        // Predicated region
        $region17: #{tpu_custom_call.1} parent=11 // pred_check
          %p193 = pneg %p87
        $region18: #{tpu_custom_call.1} parent=11 // pred_check_branch
          %195 = sbr.rel (%p193) target = $region20
        $region19: #{tpu_custom_call.1} parent=11 // pred_region
          _
        $region20: #{tpu_custom_call.1} parent=11 // pred_fallthru
          _
      $region12: #{tpu_custom_call.1} parent=5 // pred_fallthru
        _
      %p196 = scmp.lt.s32.totalorder %s19, 2
      // Predicated region
      $region21: #{tpu_custom_call.1} parent=5 // pred_check
        %p197 = pneg %p196
      $region22: #{tpu_custom_call.1} parent=5 // pred_check_branch
        %199 = sbr.rel (%p197) target = $region24
      $region23: #{tpu_custom_call.1} parent=5 // pred_region
        // Predicated region
        $region25: #{tpu_custom_call.1} parent=23 // pred_check
          %p200 = pneg %p39
        $region26: #{tpu_custom_call.1} parent=23 // pred_check_branch
          %202 = sbr.rel (%p200) target = $region28
        $region27: #{tpu_custom_call.1} parent=23 // pred_region
          %p203 = scmp.lt.s32.totalorder %s19, 1
          %s204 = scalar_select %p203, %s19, 1
          %s205 = smul.addr %s204, 18
          %s206 = smul.addr %s205, 4
          %s207 = scalar_lea.vmem %s0, %s206
        $region28: #{tpu_custom_call.1} parent=23 // pred_fallthru
          _
      $region24: #{tpu_custom_call.1} parent=5 // pred_fallthru
        _
      %p208 = scmp.le.s32.totalorder 1, %s19
      %p209 = scmp.lt.s32.totalorder %s19, 3
      %p210 = pnand %p208, %p209
      %p211 = pneg %p210
      // Predicated region
      $region29: #{tpu_custom_call.1} parent=5 // pred_check
        _
      $region30: #{tpu_custom_call.1} parent=5 // pred_check_branch
        %213 = sbr.rel (%p210) target = $region32
      $region31: #{tpu_custom_call.1} parent=5 // pred_region
        %s214 = ssub.s32 %s19, 1
        // Predicated region
        $region33: #{tpu_custom_call.1} parent=31 // pred_check
          %p215 = pneg %p66
        $region34: #{tpu_custom_call.1} parent=31 // pred_check_branch
          %217 = sbr.rel (%p215) target = $region36
        $region35: #{tpu_custom_call.1} parent=31 // pred_region
          %218 = dma.done [#allocation3], 8192
        $region36: #{tpu_custom_call.1} parent=31 // pred_fallthru
          _
        %p219 = scmp.lt.s32.totalorder %s24, 1
        %s220 = scalar_select %p219, %s24, 1
        %s221 = smul.addr %s220, 18
        %s222 = smul.addr %s221, 4
        %s223 = scalar_lea.vmem %s0, %s222
        %p224 = pneg %p45
        %p225 = pneg %p42
        %p226 = pneg %p66
        %p227 = pneg %p63
        %p228 = pneg %p87
        %p229 = pneg %p84
        %p230 = pneg %p113
        %p231 = pneg %p110
        %s232 = sand.u32 %s100, 1
        %s233 = scalar_lea.sflag [#allocation4], %s232
        %s234 = sand.u32 %s100, 1
        %s235 = smul.addr %s234, 64
        %s236 = scalar_lea.vmem [#allocation5], %s235
        %p237 = pneg %p139
        %p238 = pneg %p136
        %s239 = sand.u32 %s24, 1
        %s240 = scalar_lea.sflag [#allocation7], %s239
        %s241 = sand.u32 %s126, 1
        %s242 = smul.addr %s241, 64
        %s243 = scalar_lea.vmem [#allocation6], %s242
        %p244 = pneg %p165
        %p245 = pneg %p162
        %s246 = sand.u32 %s24, 1
        %s247 = scalar_lea.sflag [#allocation7], %s246
        %s248 = sand.u32 %s152, 1
        %s249 = smul.addr %s248, 2
        %s250 = scalar_lea.vmem [#allocation8], %s249
        %p251 = scmp.lt.s32.totalorder %s24, 1
        %s252 = scalar_select %p251, %s24, 1
        %s253 = smul.addr %s252, 18
        %s254 = smul.addr %s253, 4
        %s255 = scalar_lea.vmem %s0, %s254
        %v256 = vld [vmem:[%s255] sm:$0xf]
        %v257 = vld [vmem:[%s255 + $0x4] sm:$0x1]
        %v258 = vld [vmem:[%s255 + $0x8] sm:$0xf]
        %v259 = vld [vmem:[%s255 + $0xc] sm:$0x1]
        %v260 = vld [vmem:[%s255 + $0x10] sm:$0xf]
        %v261 = vld [vmem:[%s255 + $0x14] sm:$0x1]
        %v262 = vld [vmem:[%s255 + $0x18] sm:$0xf]
        %v263 = vld [vmem:[%s255 + $0x1c] sm:$0x1]
        %v264 = vld [vmem:[%s255 + $0x20] sm:$0xf]
        %v265 = vld [vmem:[%s255 + $0x24] sm:$0x1]
        %v266 = vld [vmem:[%s255 + $0x28] sm:$0xf]
        %v267 = vld [vmem:[%s255 + $0x2c] sm:$0x1]
        %v268 = vld [vmem:[%s255 + $0x30] sm:$0xf]
        %v269 = vld [vmem:[%s255 + $0x34] sm:$0x1]
        %v270 = vld [vmem:[%s255 + $0x38] sm:$0xf]
        %v271 = vld [vmem:[%s255 + $0x3c] sm:$0x1]
        %v272 = vld [vmem:[%s255 + $0x40] sm:$0xf]
        %v273 = vld [vmem:[%s255 + $0x44] sm:$0x1]
        %v274 = vunpack.c.l.bf16 %v256
        %v275 = vunpack.c.l.bf16 %v257
        %v276 = vunpack.c.l.bf16 %v258
        %v277 = vunpack.c.l.bf16 %v259
        %v278 = vunpack.c.l.bf16 %v260
        %v279 = vunpack.c.l.bf16 %v261
        %v280 = vunpack.c.l.bf16 %v262
        %v281 = vunpack.c.l.bf16 %v263
        %v282 = vunpack.c.l.bf16 %v264
        %v283 = vunpack.c.l.bf16 %v265
        %v284 = vunpack.c.l.bf16 %v266
        %v285 = vunpack.c.l.bf16 %v267
        %v286 = vunpack.c.l.bf16 %v268
        %v287 = vunpack.c.l.bf16 %v269
        %v288 = vunpack.c.l.bf16 %v270
        %v289 = vunpack.c.l.bf16 %v271
        %v290 = vunpack.c.l.bf16 %v272
        %v291 = vunpack.c.l.bf16 %v273
        %vm308 = vcmask 1046528
        %v309 = vrot.slane %v274, 1
        %v310 = vrot.slane %v275, 1
        %v311 = vsel %vm308, %v309, %v310
        %v312 = vrot.slane %v276, 1
        %v313 = vrot.slane %v277, 1
        %v314 = vsel %vm308, %v312, %v313
        %v315 = vrot.slane %v278, 1
        %v316 = vrot.slane %v279, 1
        %v317 = vsel %vm308, %v315, %v316
        %v318 = vrot.slane %v280, 1
        %v319 = vrot.slane %v281, 1
        %v320 = vsel %vm308, %v318, %v319
        %v321 = vrot.slane %v282, 1
        %v322 = vrot.slane %v283, 1
        %v323 = vsel %vm308, %v321, %v322
        %v324 = vrot.slane %v284, 1
        %v325 = vrot.slane %v285, 1
        %v326 = vsel %vm308, %v324, %v325
        %v327 = vrot.slane %v286, 1
        %v328 = vrot.slane %v287, 1
        %v329 = vsel %vm308, %v327, %v328
        %v330 = vrot.slane %v288, 1
        %v331 = vrot.slane %v289, 1
        %v332 = vsel %vm308, %v330, %v331
        %v343 = vrot.slane %v290, 1
        %v344 = vrot.slane %v291, 1
        %v345 = vsel %vm308, %v343, %v344
        %v347 = vpack.c.bf16 %v276, %v274
        %v348 = vpack.c.bf16 %v314, %v311
        %v349 = vpack.c.bf16 %v278, %v276
        %v350 = vpack.c.bf16 %v317, %v314
        %v351 = vpack.c.bf16 %v280, %v278
        %v352 = vpack.c.bf16 %v320, %v317
        %v353 = vpack.c.bf16 %v282, %v280
        %v354 = vpack.c.bf16 %v323, %v320
        %v355 = vpack.c.bf16 %v284, %v282
        %v356 = vpack.c.bf16 %v326, %v323
        %v357 = vpack.c.bf16 %v286, %v284
        %v358 = vpack.c.bf16 %v329, %v326
        %v359 = vpack.c.bf16 %v288, %v286
        %v360 = vpack.c.bf16 %v332, %v329
        %v361 = vpack.c.bf16 %v290, %v288
        %v362 = vpack.c.bf16 %v345, %v332
        %v363 = vld [vmem:[#allocation2] sm:$0xff]
        %v364 = vld [vmem:[#allocation2 + $0x8] sm:$0xff]
        %v365 = vld [vmem:[#allocation2 + $0x10] sm:$0xff]
        %v366 = vld [vmem:[#allocation2 + $0x18] sm:$0xff]
        %v367 = vld [vmem:[#allocation2 + $0x20] sm:$0xff]
        %v368 = vld [vmem:[#allocation2 + $0x28] sm:$0xff]
        %v369 = vld [vmem:[#allocation2 + $0x30] sm:$0xff]
        %v370 = vld [vmem:[#allocation2 + $0x38] sm:$0xff]
        %v371 = vld [vmem:[#allocation2 + $0x40] sm:$0xff]
        %v372 = vld [vmem:[#allocation2 + $0x48] sm:$0xff]
        %v373 = vld [vmem:[#allocation2 + $0x50] sm:$0xff]
        %v374 = vld [vmem:[#allocation2 + $0x58] sm:$0xff]
        %v375 = vld [vmem:[#allocation2 + $0x60] sm:$0xff]
        %v376 = vld [vmem:[#allocation2 + $0x68] sm:$0xff]
        %v377 = vld [vmem:[#allocation2 + $0x70] sm:$0xff]
        %v378 = vld [vmem:[#allocation2 + $0x78] sm:$0xff]
        %v379 = vld [vmem:[#allocation2 + $0x80] sm:$0xff]
        %v380 = vld [vmem:[#allocation2 + $0x88] sm:$0xff]
        %v381 = vld [vmem:[#allocation2 + $0x90] sm:$0xff]
        %v382 = vld [vmem:[#allocation2 + $0x98] sm:$0xff]
        %v383 = vld [vmem:[#allocation2 + $0xa0] sm:$0xff]
        %v384 = vld [vmem:[#allocation2 + $0xa8] sm:$0xff]
        %v385 = vld [vmem:[#allocation2 + $0xb0] sm:$0xff]
        %v386 = vld [vmem:[#allocation2 + $0xb8] sm:$0xff]
        %v387 = vld [vmem:[#allocation2 + $0xc0] sm:$0xff]
        %v388 = vld [vmem:[#allocation2 + $0xc8] sm:$0xff]
        %v389 = vld [vmem:[#allocation2 + $0xd0] sm:$0xff]
        %v390 = vld [vmem:[#allocation2 + $0xd8] sm:$0xff]
        %v391 = vld [vmem:[#allocation2 + $0xe0] sm:$0xff]
        %v392 = vld [vmem:[#allocation2 + $0xe8] sm:$0xff]
        %v393 = vld [vmem:[#allocation2 + $0xf0] sm:$0xff]
        %v394 = vld [vmem:[#allocation2 + $0xf8] sm:$0xff]
        %v395 = vld [vmem:[#allocation2 + $0x100] sm:$0xff]
        %v396 = vld [vmem:[#allocation2 + $0x108] sm:$0xff]
        %v397 = vld [vmem:[#allocation2 + $0x110] sm:$0xff]
        %v398 = vld [vmem:[#allocation2 + $0x118] sm:$0xff]
        %v399 = vld [vmem:[#allocation2 + $0x120] sm:$0xff]
        %v400 = vld [vmem:[#allocation2 + $0x128] sm:$0xff]
        %v401 = vld [vmem:[#allocation2 + $0x130] sm:$0xff]
        %v402 = vld [vmem:[#allocation2 + $0x138] sm:$0xff]
        %v403 = vld [vmem:[#allocation2 + $0x140] sm:$0xff]
        %v404 = vld [vmem:[#allocation2 + $0x148] sm:$0xff]
        %v405 = vld [vmem:[#allocation2 + $0x150] sm:$0xff]
        %v406 = vld [vmem:[#allocation2 + $0x158] sm:$0xff]
        %v407 = vld [vmem:[#allocation2 + $0x160] sm:$0xff]
        %v408 = vld [vmem:[#allocation2 + $0x168] sm:$0xff]
        %v409 = vld [vmem:[#allocation2 + $0x170] sm:$0xff]
        %v410 = vld [vmem:[#allocation2 + $0x178] sm:$0xff]
        %v411 = vld [vmem:[#allocation2 + $0x180] sm:$0xff]
        %v412 = vld [vmem:[#allocation2 + $0x188] sm:$0xff]
        %v413 = vld [vmem:[#allocation2 + $0x190] sm:$0xff]
        %v414 = vld [vmem:[#allocation2 + $0x198] sm:$0xff]
        %v415 = vld [vmem:[#allocation2 + $0x1a0] sm:$0xff]
        %v416 = vld [vmem:[#allocation2 + $0x1a8] sm:$0xff]
        %v417 = vld [vmem:[#allocation2 + $0x1b0] sm:$0xff]
        %v418 = vld [vmem:[#allocation2 + $0x1b8] sm:$0xff]
        %v419 = vld [vmem:[#allocation2 + $0x1c0] sm:$0xff]
        %v420 = vld [vmem:[#allocation2 + $0x1c8] sm:$0xff]
        %v421 = vld [vmem:[#allocation2 + $0x1d0] sm:$0xff]
        %v422 = vld [vmem:[#allocation2 + $0x1d8] sm:$0xff]
        %v423 = vld [vmem:[#allocation2 + $0x1e0] sm:$0xff]
        %v424 = vld [vmem:[#allocation2 + $0x1e8] sm:$0xff]
        %v425 = vld [vmem:[#allocation2 + $0x1f0] sm:$0xff]
        %v426 = vld [vmem:[#allocation2 + $0x1f8] sm:$0xff]
        %v491 = vunpack.c.l.b16 %v363
        %v492 = vunpack.c.h.b16 %v363
        %v493 = vunpack.c.l.b16 %v364
        %v494 = vunpack.c.h.b16 %v364
        %v495 = vunpack.c.l.b16 %v365
        %v496 = vunpack.c.h.b16 %v365
        %v497 = vunpack.c.l.b16 %v366
        %v498 = vunpack.c.h.b16 %v366
        %v499 = vunpack.c.l.b16 %v367
        %v500 = vunpack.c.h.b16 %v367
        %v501 = vunpack.c.l.b16 %v368
        %v502 = vunpack.c.h.b16 %v368
        %v503 = vunpack.c.l.b16 %v369
        %v504 = vunpack.c.h.b16 %v369
        %v505 = vunpack.c.l.b16 %v370
        %v506 = vunpack.c.h.b16 %v370
        %v507 = vunpack.c.l.b16 %v371
        %v508 = vunpack.c.h.b16 %v371
        %v509 = vunpack.c.l.b16 %v372
        %v510 = vunpack.c.h.b16 %v372
        %v511 = vunpack.c.l.b16 %v373
        %v512 = vunpack.c.h.b16 %v373
        %v513 = vunpack.c.l.b16 %v374
        %v514 = vunpack.c.h.b16 %v374
        %v515 = vunpack.c.l.b16 %v375
        %v516 = vunpack.c.h.b16 %v375
        %v517 = vunpack.c.l.b16 %v376
        %v518 = vunpack.c.h.b16 %v376
        %v519 = vunpack.c.l.b16 %v377
        %v520 = vunpack.c.h.b16 %v377
        %v521 = vunpack.c.l.b16 %v378
        %v522 = vunpack.c.h.b16 %v378
        %v523 = vunpack.c.l.b16 %v379
        %v524 = vunpack.c.h.b16 %v379
        %v525 = vunpack.c.l.b16 %v380
        %v526 = vunpack.c.h.b16 %v380
        %v527 = vunpack.c.l.b16 %v381
        %v528 = vunpack.c.h.b16 %v381
        %v529 = vunpack.c.l.b16 %v382
        %v530 = vunpack.c.h.b16 %v382
        %v531 = vunpack.c.l.b16 %v383
        %v532 = vunpack.c.h.b16 %v383
        %v533 = vunpack.c.l.b16 %v384
        %v534 = vunpack.c.h.b16 %v384
        %v535 = vunpack.c.l.b16 %v385
        %v536 = vunpack.c.h.b16 %v385
        %v537 = vunpack.c.l.b16 %v386
        %v538 = vunpack.c.h.b16 %v386
        %v539 = vunpack.c.l.b16 %v387
        %v540 = vunpack.c.h.b16 %v387
        %v541 = vunpack.c.l.b16 %v388
        %v542 = vunpack.c.h.b16 %v388
        %v543 = vunpack.c.l.b16 %v389
        %v544 = vunpack.c.h.b16 %v389
        %v545 = vunpack.c.l.b16 %v390
        %v546 = vunpack.c.h.b16 %v390
        %v547 = vunpack.c.l.b16 %v391
        %v548 = vunpack.c.h.b16 %v391
        %v549 = vunpack.c.l.b16 %v392
        %v550 = vunpack.c.h.b16 %v392
        %v551 = vunpack.c.l.b16 %v393
        %v552 = vunpack.c.h.b16 %v393
        %v553 = vunpack.c.l.b16 %v394
        %v554 = vunpack.c.h.b16 %v394
        %v555 = vunpack.c.l.b16 %v395
        %v556 = vunpack.c.h.b16 %v395
        %v557 = vunpack.c.l.b16 %v396
        %v558 = vunpack.c.h.b16 %v396
        %v559 = vunpack.c.l.b16 %v397
        %v560 = vunpack.c.h.b16 %v397
        %v561 = vunpack.c.l.b16 %v398
        %v562 = vunpack.c.h.b16 %v398
        %v563 = vunpack.c.l.b16 %v399
        %v564 = vunpack.c.h.b16 %v399
        %v565 = vunpack.c.l.b16 %v400
        %v566 = vunpack.c.h.b16 %v400
        %v567 = vunpack.c.l.b16 %v401
        %v568 = vunpack.c.h.b16 %v401
        %v569 = vunpack.c.l.b16 %v402
        %v570 = vunpack.c.h.b16 %v402
        %v571 = vunpack.c.l.b16 %v403
        %v572 = vunpack.c.h.b16 %v403
        %v573 = vunpack.c.l.b16 %v404
        %v574 = vunpack.c.h.b16 %v404
        %v575 = vunpack.c.l.b16 %v405
        %v576 = vunpack.c.h.b16 %v405
        %v577 = vunpack.c.l.b16 %v406
        %v578 = vunpack.c.h.b16 %v406
        %v579 = vunpack.c.l.b16 %v407
        %v580 = vunpack.c.h.b16 %v407
        %v581 = vunpack.c.l.b16 %v408
        %v582 = vunpack.c.h.b16 %v408
        %v583 = vunpack.c.l.b16 %v409
        %v584 = vunpack.c.h.b16 %v409
        %v585 = vunpack.c.l.b16 %v410
        %v586 = vunpack.c.h.b16 %v410
        %v587 = vunpack.c.l.b16 %v411
        %v588 = vunpack.c.h.b16 %v411
        %v589 = vunpack.c.l.b16 %v412
        %v590 = vunpack.c.h.b16 %v412
        %v591 = vunpack.c.l.b16 %v413
        %v592 = vunpack.c.h.b16 %v413
        %v593 = vunpack.c.l.b16 %v414
        %v594 = vunpack.c.h.b16 %v414
        %v595 = vunpack.c.l.b16 %v415
        %v596 = vunpack.c.h.b16 %v415
        %v597 = vunpack.c.l.b16 %v416
        %v598 = vunpack.c.h.b16 %v416
        %v599 = vunpack.c.l.b16 %v417
        %v600 = vunpack.c.h.b16 %v417
        %v601 = vunpack.c.l.b16 %v418
        %v602 = vunpack.c.h.b16 %v418
        %v603 = vunpack.c.l.b16 %v419
        %v604 = vunpack.c.h.b16 %v419
        %v605 = vunpack.c.l.b16 %v420
        %v606 = vunpack.c.h.b16 %v420
        %v607 = vunpack.c.l.b16 %v421
        %v608 = vunpack.c.h.b16 %v421
        %v609 = vunpack.c.l.b16 %v422
        %v610 = vunpack.c.h.b16 %v422
        %v611 = vunpack.c.l.b16 %v423
        %v612 = vunpack.c.h.b16 %v423
        %v613 = vunpack.c.l.b16 %v424
        %v614 = vunpack.c.h.b16 %v424
        %v615 = vunpack.c.l.b16 %v425
        %v616 = vunpack.c.h.b16 %v425
        %v617 = vunpack.c.l.b16 %v426
        %v618 = vunpack.c.h.b16 %v426
        %v619 = vpack.c.b16 %v493, %v491
        %v620 = vpack.c.b16 %v494, %v492
        %v621 = vpack.c.b16 %v497, %v495
        %v622 = vpack.c.b16 %v498, %v496
        %v623 = vpack.c.b16 %v501, %v499
        %v624 = vpack.c.b16 %v502, %v500
        %v625 = vpack.c.b16 %v505, %v503
        %v626 = vpack.c.b16 %v506, %v504
        %v627 = vpack.c.b16 %v509, %v507
        %v628 = vpack.c.b16 %v510, %v508
        %v629 = vpack.c.b16 %v513, %v511
        %v630 = vpack.c.b16 %v514, %v512
        %v631 = vpack.c.b16 %v517, %v515
        %v632 = vpack.c.b16 %v518, %v516
        %v633 = vpack.c.b16 %v521, %v519
        %v634 = vpack.c.b16 %v522, %v520
        %v635 = vpack.c.b16 %v525, %v523
        %v636 = vpack.c.b16 %v526, %v524
        %v637 = vpack.c.b16 %v529, %v527
        %v638 = vpack.c.b16 %v530, %v528
        %v639 = vpack.c.b16 %v533, %v531
        %v640 = vpack.c.b16 %v534, %v532
        %v641 = vpack.c.b16 %v537, %v535
        %v642 = vpack.c.b16 %v538, %v536
        %v643 = vpack.c.b16 %v541, %v539
        %v644 = vpack.c.b16 %v542, %v540
        %v645 = vpack.c.b16 %v545, %v543
        %v646 = vpack.c.b16 %v546, %v544
        %v647 = vpack.c.b16 %v549, %v547
        %v648 = vpack.c.b16 %v550, %v548
        %v649 = vpack.c.b16 %v553, %v551
        %v650 = vpack.c.b16 %v554, %v552
        %v651 = vpack.c.b16 %v557, %v555
        %v652 = vpack.c.b16 %v558, %v556
        %v653 = vpack.c.b16 %v561, %v559
        %v654 = vpack.c.b16 %v562, %v560
        %v655 = vpack.c.b16 %v565, %v563
        %v656 = vpack.c.b16 %v566, %v564
        %v657 = vpack.c.b16 %v569, %v567
        %v658 = vpack.c.b16 %v570, %v568
        %v659 = vpack.c.b16 %v573, %v571
        %v660 = vpack.c.b16 %v574, %v572
        %v661 = vpack.c.b16 %v577, %v575
        %v662 = vpack.c.b16 %v578, %v576
        %v663 = vpack.c.b16 %v581, %v579
        %v664 = vpack.c.b16 %v582, %v580
        %v665 = vpack.c.b16 %v585, %v583
        %v666 = vpack.c.b16 %v586, %v584
        %v667 = vpack.c.b16 %v589, %v587
        %v668 = vpack.c.b16 %v590, %v588
        %v669 = vpack.c.b16 %v593, %v591
        %v670 = vpack.c.b16 %v594, %v592
        %v671 = vpack.c.b16 %v597, %v595
        %v672 = vpack.c.b16 %v598, %v596
        %v673 = vpack.c.b16 %v601, %v599
        %v674 = vpack.c.b16 %v602, %v600
        %v675 = vpack.c.b16 %v605, %v603
        %v676 = vpack.c.b16 %v606, %v604
        %v677 = vpack.c.b16 %v609, %v607
        %v678 = vpack.c.b16 %v610, %v608
        %v679 = vpack.c.b16 %v613, %v611
        %v680 = vpack.c.b16 %v614, %v612
        %v681 = vpack.c.b16 %v617, %v615
        %v682 = vpack.c.b16 %v618, %v616
        %747 = vmatprep.subr.bf16.mxu0 %v620
        %748 = vmatpush1.bf16.msra.mxu0 %v619
        %749 = vmatprep.subr.bf16.mxu0 %v622
        %750 = vmatpush1.bf16.msra.mxu0 %v621
        %751 = vmatprep.subr.bf16.mxu0 %v624
        %752 = vmatpush1.bf16.msra.mxu0 %v623
        %753 = vmatprep.subr.bf16.mxu0 %v626
        %754 = vmatpush1.bf16.msra.mxu0 %v625
        %755 = vmatprep.subr.bf16.mxu0 %v628
        %756 = vmatpush1.bf16.msra.mxu0 %v627
        %757 = vmatprep.subr.bf16.mxu0 %v630
        %758 = vmatpush1.bf16.msra.mxu0 %v629
        %759 = vmatprep.subr.bf16.mxu0 %v632
        %760 = vmatpush1.bf16.msra.mxu0 %v631
        %761 = vmatprep.subr.bf16.mxu0 %v634
        %762 = vmatpush1.bf16.msra.mxu0 %v633
        %763 = vmatprep.subr.bf16.mxu0 %v636
        %764 = vmatpush1.bf16.msra.mxu0 %v635
        %765 = vmatprep.subr.bf16.mxu0 %v638
        %766 = vmatpush1.bf16.msra.mxu0 %v637
        %767 = vmatprep.subr.bf16.mxu0 %v640
        %768 = vmatpush1.bf16.msra.mxu0 %v639
        %769 = vmatprep.subr.bf16.mxu0 %v642
        %770 = vmatpush1.bf16.msra.mxu0 %v641
        %771 = vmatprep.subr.bf16.mxu0 %v644
        %772 = vmatpush1.bf16.msra.mxu0 %v643
        %773 = vmatprep.subr.bf16.mxu0 %v646
        %774 = vmatpush1.bf16.msra.mxu0 %v645
        %775 = vmatprep.subr.bf16.mxu0 %v648
        %776 = vmatpush1.bf16.msra.mxu0 %v647
        %777 = vmatprep.subr.bf16.mxu0 %v650
        %778 = vmatpush1.bf16.msra.mxu0 %v649
        %779 = vmatprep.mubr.bf16.mxu0 %v348
        %780 = vmatmul.mubr.bf16.gmra.mrb[0].mxu0 %v347
        %v781 = vpop.f32.mrb[0].mxu0
        %v782 = vadd.f32 0.0, %v781
        %v783 = vpop.f32.mrb[0].mxu0
        %v784 = vadd.f32 0.0, %v783
        %v785 = vpop.f32.mrb[0].mxu0
        %v786 = vadd.f32 0.0, %v785
        %v787 = vpop.f32.mrb[0].mxu0
        %v788 = vadd.f32 0.0, %v787
        %789 = vmatprep.mubr.bf16.mxu0 %v352
        %790 = vmatmul.mubr.bf16.gmra.mrb[0].mxu0 %v351
        %v791 = vpop.f32.mrb[0].mxu0
        %v792 = vadd.f32 0.0, %v791
        %v793 = vpop.f32.mrb[0].mxu0
        %v794 = vadd.f32 0.0, %v793
        %v795 = vpop.f32.mrb[0].mxu0
        %v796 = vadd.f32 0.0, %v795
        %v797 = vpop.f32.mrb[0].mxu0
        %v798 = vadd.f32 0.0, %v797
        %799 = vmatprep.mubr.bf16.mxu0 %v356
        %800 = vmatmul.mubr.bf16.gmra.mrb[0].mxu0 %v355
        %v801 = vpop.f32.mrb[0].mxu0
        %v802 = vadd.f32 0.0, %v801
        %v803 = vpop.f32.mrb[0].mxu0
        %v804 = vadd.f32 0.0, %v803
        %v805 = vpop.f32.mrb[0].mxu0
        %v806 = vadd.f32 0.0, %v805
        %v807 = vpop.f32.mrb[0].mxu0
        %v808 = vadd.f32 0.0, %v807
        %809 = vmatprep.mubr.bf16.mxu0 %v360
        %810 = vmatmul.mubr.bf16.gmra.mrb[0].mxu0 %v359
        %v811 = vpop.f32.mrb[0].mxu0
        %v812 = vadd.f32 0.0, %v811
        %v813 = vpop.f32.mrb[0].mxu0
        %v814 = vadd.f32 0.0, %v813
        %v815 = vpop.f32.mrb[0].mxu0
        %v816 = vadd.f32 0.0, %v815
        %v817 = vpop.f32.mrb[0].mxu0
        %v818 = vadd.f32 0.0, %v817
        %819 = vdwg.mxu0
        %820 = vmatprep.subr.bf16.mxu0 %v652
        %821 = vmatpush1.bf16.msra.mxu0 %v651
        %822 = vmatprep.subr.bf16.mxu0 %v654
        %823 = vmatpush1.bf16.msra.mxu0 %v653
        %824 = vmatprep.subr.bf16.mxu0 %v656
        %825 = vmatpush1.bf16.msra.mxu0 %v655
        %826 = vmatprep.subr.bf16.mxu0 %v658
        %827 = vmatpush1.bf16.msra.mxu0 %v657
        %828 = vmatprep.subr.bf16.mxu0 %v660
        %829 = vmatpush1.bf16.msra.mxu0 %v659
        %830 = vmatprep.subr.bf16.mxu0 %v662
        %831 = vmatpush1.bf16.msra.mxu0 %v661
        %832 = vmatprep.subr.bf16.mxu0 %v664
        %833 = vmatpush1.bf16.msra.mxu0 %v663
        %834 = vmatprep.subr.bf16.mxu0 %v666
        %835 = vmatpush1.bf16.msra.mxu0 %v665
        %836 = vmatprep.subr.bf16.mxu0 %v668
        %837 = vmatpush1.bf16.msra.mxu0 %v667
        %838 = vmatprep.subr.bf16.mxu0 %v670
        %839 = vmatpush1.bf16.msra.mxu0 %v669
        %840 = vmatprep.subr.bf16.mxu0 %v672
        %841 = vmatpush1.bf16.msra.mxu0 %v671
        %842 = vmatprep.subr.bf16.mxu0 %v674
        %843 = vmatpush1.bf16.msra.mxu0 %v673
        %844 = vmatprep.subr.bf16.mxu0 %v676
        %845 = vmatpush1.bf16.msra.mxu0 %v675
        %846 = vmatprep.subr.bf16.mxu0 %v678
        %847 = vmatpush1.bf16.msra.mxu0 %v677
        %848 = vmatprep.subr.bf16.mxu0 %v680
        %849 = vmatpush1.bf16.msra.mxu0 %v679
        %850 = vmatprep.subr.bf16.mxu0 %v682
        %851 = vmatpush1.bf16.msra.mxu0 %v681
        %852 = vmatprep.mubr.bf16.mxu0 %v350
        %853 = vmatmul.mubr.bf16.gmra.mrb[0].mxu0 %v349
        %v854 = vpop.f32.mrb[0].mxu0
        %v855 = vadd.f32 %v782, %v854
        %v856 = vpop.f32.mrb[0].mxu0
        %v857 = vadd.f32 %v784, %v856
        %v858 = vpop.f32.mrb[0].mxu0
        %v859 = vadd.f32 %v786, %v858
        %v860 = vpop.f32.mrb[0].mxu0
        %v861 = vadd.f32 %v788, %v860
        %862 = vmatprep.mubr.bf16.mxu0 %v354
        %863 = vmatmul.mubr.bf16.gmra.mrb[0].mxu0 %v353
        %v864 = vpop.f32.mrb[0].mxu0
        %v865 = vadd.f32 %v792, %v864
        %v866 = vpop.f32.mrb[0].mxu0
        %v867 = vadd.f32 %v794, %v866
        %v868 = vpop.f32.mrb[0].mxu0
        %v869 = vadd.f32 %v796, %v868
        %v870 = vpop.f32.mrb[0].mxu0
        %v871 = vadd.f32 %v798, %v870
        %872 = vmatprep.mubr.bf16.mxu0 %v358
        %873 = vmatmul.mubr.bf16.gmra.mrb[0].mxu0 %v357
        %v874 = vpop.f32.mrb[0].mxu0
        %v875 = vadd.f32 %v802, %v874
        %v876 = vpop.f32.mrb[0].mxu0
        %v877 = vadd.f32 %v804, %v876
        %v878 = vpop.f32.mrb[0].mxu0
        %v879 = vadd.f32 %v806, %v878
        %v880 = vpop.f32.mrb[0].mxu0
        %v881 = vadd.f32 %v808, %v880
        %882 = vmatprep.mubr.bf16.mxu0 %v362
        %883 = vmatmul.mubr.bf16.gmra.mrb[0].mxu0 %v361
        %v884 = vpop.f32.mrb[0].mxu0
        %v885 = vadd.f32 %v812, %v884
        %v886 = vpop.f32.mrb[0].mxu0
        %v887 = vadd.f32 %v814, %v886
        %v888 = vpop.f32.mrb[0].mxu0
        %v889 = vadd.f32 %v816, %v888
        %v890 = vpop.f32.mrb[0].mxu0
        %v891 = vadd.f32 %v818, %v890
        %892 = vdwg.mxu0
        %v893 = vld [vmem:[%s2] sm:$0x1]
        %v895 = vlaneseq
        %v896 = vshrl.u32 %v895, 7
        %v897 = vsub.s32 0, %v896
        %v898 = vrot.slane %v893, %v897
        %v900 = vadd.f32 %v857, %v898
        %v901 = vadd.f32 %v861, %v898
        %v902 = vadd.f32 %v867, %v898
        %v903 = vadd.f32 %v871, %v898
        %v904 = vadd.f32 %v877, %v898
        %v905 = vadd.f32 %v881, %v898
        %v906 = vadd.f32 %v887, %v898
        %v907 = vadd.f32 %v891, %v898
        %908 = vst [vmem:[%s236] sm:$0xff] %v855
        %909 = vst [vmem:[%s236 + $0x8] sm:$0xff] %v859
        %910 = vst [vmem:[%s236 + $0x10] sm:$0xff] %v865
        %911 = vst [vmem:[%s236 + $0x18] sm:$0xff] %v869
        %912 = vst [vmem:[%s236 + $0x20] sm:$0xff] %v875
        %913 = vst [vmem:[%s236 + $0x28] sm:$0xff] %v879
        %914 = vst [vmem:[%s236 + $0x30] sm:$0xff] %v885
        %915 = vst [vmem:[%s236 + $0x38] sm:$0xff] %v889
        %916 = vst [vmem:[%s243] sm:$0xff] %v900
        %917 = vst [vmem:[%s243 + $0x8] sm:$0xff] %v901
        %918 = vst [vmem:[%s243 + $0x10] sm:$0xff] %v902
        %919 = vst [vmem:[%s243 + $0x18] sm:$0xff] %v903
        %920 = vst [vmem:[%s243 + $0x20] sm:$0xff] %v904
        %921 = vst [vmem:[%s243 + $0x28] sm:$0xff] %v905
        %922 = vst [vmem:[%s243 + $0x30] sm:$0xff] %v906
        %923 = vst [vmem:[%s243 + $0x38] sm:$0xff] %v907
        %v924 = vadd.f32 %v855, %v859
        %v925 = vadd.f32 %v924, %v865
        %v926 = vadd.f32 %v925, %v869
        %v927 = vadd.f32 %v926, %v875
        %v928 = vadd.f32 %v927, %v879
        %v929 = vadd.f32 %v928, %v885
        %v930 = vadd.f32 %v929, %v889
        %v931 = vrot.slane %v930, 4
        %v932 = vadd.f32 %v930, %v931
        %v933 = vrot.slane %v932, 2
        %v934 = vadd.f32 %v932, %v933
        %v935 = vrot.slane %v934, 1
        %v936 = vadd.f32 %v934, %v935
        %937 = vst [vmem:[%s250] sm:$0x1] %v936
        %v938 = vmul.f32 %v855, %v855
        %v939 = vmul.f32 %v859, %v859
        %v940 = vmul.f32 %v865, %v865
        %v941 = vmul.f32 %v869, %v869
        %v942 = vmul.f32 %v875, %v875
        %v943 = vmul.f32 %v879, %v879
        %v944 = vmul.f32 %v885, %v885
        %v945 = vmul.f32 %v889, %v889
        %v946 = vadd.f32 %v938, %v939
        %v947 = vadd.f32 %v946, %v940
        %v948 = vadd.f32 %v947, %v941
        %v949 = vadd.f32 %v948, %v942
        %v950 = vadd.f32 %v949, %v943
        %v951 = vadd.f32 %v950, %v944
        %v952 = vadd.f32 %v951, %v945
        %v953 = vrot.slane %v952, 4
        %v954 = vadd.f32 %v952, %v953
        %v955 = vrot.slane %v954, 2
        %v956 = vadd.f32 %v954, %v955
        %v957 = vrot.slane %v956, 1
        %v958 = vadd.f32 %v956, %v957
        %959 = vst [vmem:[%s250 + $0x1] sm:$0x1] %v958
        %s960 = sand.u32 %s100, 1
        %s961 = scalar_lea.sflag [#allocation4], %s960
        %s962 = sand.u32 %s100, 1
        %s963 = smul.addr %s962, 64
        %s964 = scalar_lea.vmem [#allocation5], %s963
        %s965 = sand.u32 %s24, 1
        %s966 = scalar_lea.sflag [#allocation7], %s965
        %s967 = sand.u32 %s126, 1
        %s968 = smul.addr %s967, 64
        %s969 = scalar_lea.vmem [#allocation6], %s968
        %s970 = sand.u32 %s24, 1
        %s971 = scalar_lea.sflag [#allocation7], %s970
        %s972 = sand.u32 %s152, 1
        %s973 = smul.addr %s972, 2
        %s974 = scalar_lea.vmem [#allocation8], %s973
        // Predicated region
        $region37: #{tpu_custom_call.1} parent=31 // pred_check
          %p975 = pneg %p110
        $region38: #{tpu_custom_call.1} parent=31 // pred_check_branch
          %977 = sbr.rel (%p975) target = $region40
        $region39: #{tpu_custom_call.1} parent=31 // pred_region
          %s979 = ssub.s32 1024, 1024
          %980 = vsyncadd %s961, %s979
          %s981 = smul.addr %s24, 8
          %s982 = smul.addr %s981, 128
          %s983 = scalar_lea.hbm %s3, %s982
          %s984 = sshll.u32 %s964, 4
          %s985 = int_to_ptr.vmem [resolvable:$true] %s984
          %990 = dma.vmem_to_hbm [thread:$0]  %s985, 1024, %s983, %s961, 128, 128, 8
        $region40: #{tpu_custom_call.1} parent=31 // pred_fallthru
          _
        // Predicated region
        $region41: #{tpu_custom_call.1} parent=31 // pred_check
          %p991 = pneg %p136
        $region42: #{tpu_custom_call.1} parent=31 // pred_check_branch
          %993 = sbr.rel (%p991) target = $region44
        $region43: #{tpu_custom_call.1} parent=31 // pred_region
          %s995 = ssub.s32 1024, 1024
          %996 = vsyncadd %s966, %s995
          %s997 = smul.addr %s24, 8
          %s998 = smul.addr %s997, 128
          %s999 = scalar_lea.hbm %s4, %s998
          %s1000 = sshll.u32 %s969, 4
          %s1001 = int_to_ptr.vmem [resolvable:$true] %s1000
          %1006 = dma.vmem_to_hbm [thread:$0]  %s1001, 1024, %s999, %s966, 128, 128, 8
        $region44: #{tpu_custom_call.1} parent=31 // pred_fallthru
          _
        // Predicated region
        $region45: #{tpu_custom_call.1} parent=31 // pred_check
          %p1007 = pneg %p162
        $region46: #{tpu_custom_call.1} parent=31 // pred_check_branch
          %1009 = sbr.rel (%p1007) target = $region48
        $region47: #{tpu_custom_call.1} parent=31 // pred_region
          %s1011 = ssub.s32 32, 32
          %1012 = vsyncadd %s971, %s1011
          %s1013 = smul.addr %s24, 32
          %s1014 = scalar_lea.hbm %s5, %s1013
          %s1016 = sshll.u32 %s974, 4
          %s1017 = int_to_ptr.vmem [resolvable:$true] %s1016
          %1019 = dma.vmem_to_hbm [thread:$0]  %s1017, 32, %s1014, %s971
        $region48: #{tpu_custom_call.1} parent=31 // pred_fallthru
          _
      $region32: #{tpu_custom_call.1} parent=5 // pred_fallthru
        _
      %p1020 = scmp.le.s32.totalorder 2, %s19
      // Predicated region
      $region49: #{tpu_custom_call.1} parent=5 // pred_check
        %p1021 = pneg %p1020
      $region50: #{tpu_custom_call.1} parent=5 // pred_check_branch
        %1023 = sbr.rel (%p1021) target = $region52
      $region51: #{tpu_custom_call.1} parent=5 // pred_region
        %s1024 = ssub.s32 %s19, 2
        // Predicated region
        $region53: #{tpu_custom_call.1} parent=51 // pred_check
          %p1025 = pneg %p116
        $region54: #{tpu_custom_call.1} parent=51 // pred_check_branch
          %1027 = sbr.rel (%p1025) target = $region56
        $region55: #{tpu_custom_call.1} parent=51 // pred_region
          %s1028 = sand.u32 %s101, 1
          %s1029 = scalar_lea.sflag [#allocation4], %s1028
          %s1030 = sand.u32 %s101, 1
          %s1031 = smul.addr %s1030, 64
          %s1032 = scalar_lea.vmem [#allocation5], %s1031
          %1033 = dma.done %s1029, 1024
        $region56: #{tpu_custom_call.1} parent=51 // pred_fallthru
          _
        // Predicated region
        $region57: #{tpu_custom_call.1} parent=51 // pred_check
          %p1034 = pneg %p142
        $region58: #{tpu_custom_call.1} parent=51 // pred_check_branch
          %1036 = sbr.rel (%p1034) target = $region60
        $region59: #{tpu_custom_call.1} parent=51 // pred_region
          %s1037 = sand.u32 %s25, 1
          %s1038 = scalar_lea.sflag [#allocation7], %s1037
          %s1039 = sand.u32 %s127, 1
          %s1040 = smul.addr %s1039, 64
          %s1041 = scalar_lea.vmem [#allocation6], %s1040
          %1042 = dma.done %s1038, 1024
        $region60: #{tpu_custom_call.1} parent=51 // pred_fallthru
          _
        // Predicated region
        $region61: #{tpu_custom_call.1} parent=51 // pred_check
          %p1043 = pneg %p168
        $region62: #{tpu_custom_call.1} parent=51 // pred_check_branch
          %1045 = sbr.rel (%p1043) target = $region64
        $region63: #{tpu_custom_call.1} parent=51 // pred_region
          %s1046 = sand.u32 %s25, 1
          %s1047 = scalar_lea.sflag [#allocation7], %s1046
          %s1048 = sand.u32 %s153, 1
          %s1049 = smul.addr %s1048, 2
          %s1050 = scalar_lea.vmem [#allocation8], %s1049
          %1051 = dma.done %s1047, 32
        $region64: #{tpu_custom_call.1} parent=51 // pred_fallthru
          _
      $region52: #{tpu_custom_call.1} parent=5 // pred_fallthru
        _
    $region6: #{tpu_custom_call.1} parent=1 // loop_footer
      %s23 = sadd.s32 1, %s19
    $region7: #{tpu_custom_call.1} parent=1 // loop_footer_branch
      %18 = sbr.rel target = $region3
    $region8: #{tpu_custom_call.1} parent=1 // loop_exit
      _
    %1052 = vsyncpa [#allocation3], 1
    %s1053 = scalar_lea.sflag [#allocation3], 1
    %1054 = vsyncpa %s1053, 1
    %1055 = vsyncpa [#allocation4], 1
    %s1056 = scalar_lea.sflag [#allocation4], 1
    %1057 = vsyncpa %s1056, 1
    %1058 = vsyncpa [#allocation7], 1
    %s1059 = scalar_lea.sflag [#allocation7], 1
    %1060 = vsyncpa %s1059, 1

</llo_original>
